<compile_context>
chip_gen: v5e
topology: v5e:2x2
jax: 0.10.0
libtpu: 0.0.40
codegen_flags: <defaults>
</compile_context>

<pallas_src>
from functools import partial

import jax
import jax.numpy as jnp
import numpy as np
from jax.experimental import pallas as pl
from jax.experimental.pallas import tpu as pltpu


def expert_policy_kernel(
    a_ref,            # [Bt, N, D] actions tile for this grid step
    w1_ref, b1_ref,   # fused layer-1:  [D, 2H], [1, 2H]   (attention | policy)
    w2_ref, b2_ref,   # fused layer-2:  [2H, 2H], [1, 2H]  (blockdiag(I_H, pw2))
    wh_ref, bh_ref,   # fused heads:    [2H, 2],  [1, 2]   (col0: aw2, col1: pw3)
    out_ref,          # out: [Bt, N, 2]  (col0 = weighted, col1 = att)
):
    bt, n, d = a_ref.shape
    # Leading-dims-only merge (Bt, N, D) -> (Bt*N, D): layout-free (no lane crossing).
    a = a_ref[...].reshape(bt * n, d)

    # Layer 1 (shared): ReLU(a @ [aw1|pw1] + [ab1|pb1])  -> [Bt*N, 2H]
    h = jnp.maximum(
        jnp.dot(a, w1_ref[...], preferred_element_type=jnp.float32) + b1_ref[...],
        0.0,
    )

    # Layer 2 (fused): ReLU(h @ blockdiag(I, pw2) + [0|pb2]) -> [Bt*N, 2H]
    #   cols [:H]  = h_att   (identity block; ReLU(ReLU(x)) == ReLU(x))
    #   cols [H:]  = ReLU(h1 @ pw2 + pb2)
    h2f = jnp.maximum(
        jnp.dot(h, w2_ref[...], preferred_element_type=jnp.float32) + b2_ref[...],
        0.0,
    )

    # Heads (fused): [Bt*N, 2H] @ [2H, 2] -> [Bt*N, 2]; col0 = att_logits, col1 = pol
    heads = (
        jnp.dot(h2f, wh_ref[...], preferred_element_type=jnp.float32) + bh_ref[...]
    )

    # Restore per-instance view (splits leading dim only -> layout-free).
    heads3 = heads.reshape(bt, n, 2)
    att_logits = heads3[:, :, 0:1]                  # [Bt, N, 1]
    pol = heads3[:, :, 1:2]                         # [Bt, N, 1]

    # Softmax over the action axis (N == sublane axis). Exact divide for tolerance.
    m = jnp.max(att_logits, axis=1, keepdims=True)
    e = jnp.exp(att_logits - m)
    att = e / jnp.sum(e, axis=1, keepdims=True)     # [Bt, N, 1]

    # Single contiguous packed store per grid step.
    out_ref[...] = jnp.concatenate([pol * att, att], axis=-1)  # [Bt, N, 2]


def pack_params(p):
    """Fuse the 10 PyTorch Linear weights/biases into 6 kernel arrays (done once)."""
    H = p["pw2"].shape[0]
    f32 = jnp.float32

    w1f = jnp.concatenate([p["aw1"], p["pw1"]], axis=1)            # [D, 2H]
    b1f = jnp.concatenate([p["ab1"], p["pb1"]], axis=1)            # [1, 2H]

    w2f = jnp.zeros((2 * H, 2 * H), f32)
    w2f = w2f.at[:H, :H].set(jnp.eye(H, dtype=f32))                # pass-through h_att
    w2f = w2f.at[H:, H:].set(p["pw2"])                             # policy layer 2
    b2f = jnp.concatenate([jnp.zeros((1, H), f32), p["pb2"]], axis=1)

    whf = jnp.zeros((2 * H, 2), f32)
    whf = whf.at[:H, 0:1].set(p["aw2"])                            # attention head -> col 0
    whf = whf.at[H:, 1:2].set(p["pw3"])                            # policy head    -> col 1
    bhf = jnp.concatenate([p["ab2"], p["pb3"]], axis=1)            # [1, 2]

    return dict(w1f=w1f, b1f=b1f, w2f=w2f, b2f=b2f, whf=whf, bhf=bhf)


@partial(jax.jit, static_argnames=("block_batch",))
def expert_policy_forward_batched(actions_bnd, packed, *, block_batch=512):
    """actions_bnd: [B, N, D] float32; packed: output of pack_params.

    block_batch: instances per grid step. Default 512 keeps the padded VMEM
    footprint ~16 MB (under the 32 MB scoped default on v5e/v6e/v7x) while
    amortizing per-step overhead over 512*N rows of MXU work.
    """
    B, N, D = actions_bnd.shape
    H2 = packed["w1f"].shape[1]  # 2H

    bt = min(block_batch, B)
    nb = -(-B // bt)                       # ceil-div grid steps
    Bp = nb * bt
    if Bp != B:
        # Zero-pad the batch axis only (never N, so the softmax sees no padded rows).
        actions_bnd = jnp.pad(actions_bnd, ((0, Bp - B), (0, 0), (0, 0)))

    weight_bytes = (D * H2 + H2 + H2 * H2 + H2 + H2 * 2 + 2) * 4
    flops = 2 * Bp * N * (D * H2 + H2 * H2 + H2 * 2)

    out = pl.pallas_call(
        expert_policy_kernel,
        out_shape=jax.ShapeDtypeStruct((Bp, N, 2), jnp.float32),
        grid_spec=pltpu.PrefetchScalarGridSpec(
            num_scalar_prefetch=0,
            grid=(nb,),
            in_specs=[
                pl.BlockSpec((bt, N, D), lambda b: (b, 0, 0)),     # actions tile
                pl.BlockSpec((D, H2), lambda b: (0, 0)),           # weights: broadcast
                pl.BlockSpec((1, H2), lambda b: (0, 0)),
                pl.BlockSpec((H2, H2), lambda b: (0, 0)),
                pl.BlockSpec((1, H2), lambda b: (0, 0)),
                pl.BlockSpec((H2, 2), lambda b: (0, 0)),
                pl.BlockSpec((1, 2), lambda b: (0, 0)),
            ],
            out_specs=pl.BlockSpec((bt, N, 2), lambda b: (b, 0, 0)),
        ),
        compiler_params=pltpu.CompilerParams(
            dimension_semantics=("parallel",),   # shards batch steps across v7x's 2 TCs
        ),
        cost_estimate=pl.CostEstimate(
            flops=flops,
            transcendentals=Bp * N,
            bytes_accessed=Bp * N * (D + 2) * 4 + weight_bytes,
        ),
    )(
        actions_bnd,
        packed["w1f"], packed["b1f"],
        packed["w2f"], packed["b2f"],
        packed["whf"], packed["bhf"],
    )

    out = out[:B]                # drop batch padding
    weighted = out[..., 0]       # [B, N]
    att = out[..., 1:2]          # [B, N, 1]
    return weighted, att


def expert_policy_forward(actions, packed):
    """Single-instance API matching PyTorch: actions [N, D] -> ([N], [N, 1])."""
    weighted, att = expert_policy_forward_batched(actions[None], packed, block_batch=1)
    return weighted[0], att[0]


def init_params(key, input_dim, hidden_dim):
    """Deterministic init mirroring nn.Linear shapes (stored as [in, out])."""
    ks = jax.random.split(key, 5)

    def lin(k, fan_in, fan_out):
        bound = 1.0 / np.sqrt(fan_in)
        kw, kb = jax.random.split(k)
        w = jax.random.uniform(kw, (fan_in, fan_out), jnp.float32, -bound, bound)
        b = jax.random.uniform(kb, (1, fan_out), jnp.float32, -bound, bound)
        return w, b

    aw1, ab1 = lin(ks[0], input_dim, hidden_dim)
    aw2, ab2 = lin(ks[1], hidden_dim, 1)
    pw1, pb1 = lin(ks[2], input_dim, hidden_dim)
    pw2, pb2 = lin(ks[3], hidden_dim, hidden_dim)
    pw3, pb3 = lin(ks[4], hidden_dim, 1)
    return dict(
        aw1=aw1, ab1=ab1, aw2=aw2, ab2=ab2,
        pw1=pw1, pb1=pb1, pw2=pw2, pb2=pb2, pw3=pw3, pb3=pb3,
    )


def reference_forward(actions, p):
    """Pure-JAX reference of the PyTorch forward (for validation)."""
    h = jnp.maximum(actions @ p["aw1"] + p["ab1"], 0.0)
    logits = h @ p["aw2"] + p["ab2"]
    att = jax.nn.softmax(logits, axis=0)
    h1 = jnp.maximum(actions @ p["pw1"] + p["pb1"], 0.0)
    h2 = jnp.maximum(h1 @ p["pw2"] + p["pb2"], 0.0)
    pol = (h2 @ p["pw3"] + p["pb3"])[:, 0]
    return pol * att[:, 0], att


if __name__ == "__main__":
    input_dim, hidden_dim = 16, 32
    num_actions = 8    # N "available_actions"
    batch = 50         # batched (per-timestep) variant; not a multiple of block_batch
    block_batch = 16   # -> 4 grid steps (>= 2 so v7x megacore sharding is exercised)

    key = jax.random.PRNGKey(0)
    k_params, k_act, k_batch = jax.random.split(key, 3)
    params = init_params(k_params, input_dim, hidden_dim)
    packed = pack_params(params)

    # --- single instance (matches the PyTorch forward exactly) ---
    actions = jax.random.normal(k_act, (num_actions, input_dim), jnp.float32)
    weighted, att = expert_policy_forward(actions, packed)
    jax.block_until_ready((weighted, att))

    w_ref, a_ref = reference_forward(actions, params)
    np.testing.assert_allclose(np.asarray(weighted), np.asarray(w_ref), rtol=1e-5, atol=1e-5)
    np.testing.assert_allclose(np.asarray(att), np.asarray(a_ref), rtol=1e-5, atol=1e-5)
    assert weighted.shape == (num_actions,) and att.shape == (num_actions, 1)

    # --- batched variant: one pallas_call, many instances per grid step ---
    actions_b = jax.random.normal(k_batch, (batch, num_actions, input_dim), jnp.float32)
    wb, ab = expert_policy_forward_batched(actions_b, packed, block_batch=block_batch)
    jax.block_until_ready((wb, ab))

    wb_ref, ab_ref = jax.vmap(lambda a: reference_forward(a, params))(actions_b)
    np.testing.assert_allclose(np.asarray(wb), np.asarray(wb_ref), rtol=1e-5, atol=1e-5)
    np.testing.assert_allclose(np.asarray(ab), np.asarray(ab_ref), rtol=1e-5, atol=1e-5)
    assert wb.shape == (batch, num_actions) and ab.shape == (batch, num_actions, 1)

    print("KERNEL_OK")
</pallas_src>

<mosaic_0001>
module attributes {stable_mosaic.version = 11 : i64} {
  func.func @expert_policy_kernel(%arg0: i32, %arg1: memref<1x8x16xf32, #tpu.memory_space<vmem>>, %arg2: memref<16x64xf32, #tpu.memory_space<vmem>>, %arg3: memref<1x64xf32, #tpu.memory_space<vmem>>, %arg4: memref<64x64xf32, #tpu.memory_space<vmem>>, %arg5: memref<1x64xf32, #tpu.memory_space<vmem>>, %arg6: memref<64x2xf32, #tpu.memory_space<vmem>>, %arg7: memref<1x2xf32, #tpu.memory_space<vmem>>, %arg8: memref<1x8x2xf32, #tpu.memory_space<vmem>>) attributes {dimension_semantics = [#tpu.dimension_semantics<parallel>], iteration_bounds = array<i64: 1>, scalar_prefetch = 0 : i64, scratch_operands = 0 : i64, tpu.core_type = #tpu.core_type<tc>, window_params = [{transform_indices = @transform_0, window_bounds = array<i64: 1, 8, 16>}, {pipeline_mode = #tpu.pipeline_mode<synchronous>, transform_indices = @transform_1, window_bounds = array<i64: 16, 64>}, {pipeline_mode = #tpu.pipeline_mode<synchronous>, transform_indices = @transform_2, window_bounds = array<i64: 1, 64>}, {pipeline_mode = #tpu.pipeline_mode<synchronous>, transform_indices = @transform_3, window_bounds = array<i64: 64, 64>}, {pipeline_mode = #tpu.pipeline_mode<synchronous>, transform_indices = @transform_4, window_bounds = array<i64: 1, 64>}, {pipeline_mode = #tpu.pipeline_mode<synchronous>, transform_indices = @transform_5, window_bounds = array<i64: 64, 2>}, {pipeline_mode = #tpu.pipeline_mode<synchronous>, transform_indices = @transform_6, window_bounds = array<i64: 1, 2>}, {transform_indices = @transform_7, window_bounds = array<i64: 1, 8, 2>}]} {
    %c0 = arith.constant 0 : index
    %c0_0 = arith.constant 0 : index
    %c0_1 = arith.constant 0 : index
    %0 = vector.load %arg1[%c0, %c0_0, %c0_1] : memref<1x8x16xf32, #tpu.memory_space<vmem>>, vector<1x8x16xf32>
    %1 = vector.shape_cast %0 : vector<1x8x16xf32> to vector<8x16xf32>
    %c0_2 = arith.constant 0 : index
    %c0_3 = arith.constant 0 : index
    %2 = vector.load %arg2[%c0_2, %c0_3] : memref<16x64xf32, #tpu.memory_space<vmem>>, vector<16x64xf32>
    %cst = arith.constant dense<0.000000e+00> : vector<8x64xf32>
    %3 = tpu.matmul %1, %2, %cst {dimension_numbers = #tpu.dot_dimension_numbers<[1], [0], [0], [1], [0, 0, 1, 1], [], []>} : vector<8x16xf32>, vector<16x64xf32>, vector<8x64xf32> -> vector<8x64xf32>
    %c0_4 = arith.constant 0 : index
    %c0_5 = arith.constant 0 : index
    %4 = vector.load %arg3[%c0_4, %c0_5] : memref<1x64xf32, #tpu.memory_space<vmem>>, vector<1x64xf32>
    %5 = vector.broadcast %4 : vector<1x64xf32> to vector<8x64xf32>
    %6 = arith.addf %3, %5 : vector<8x64xf32>
    %cst_6 = arith.constant 0.000000e+00 : f32
    %7 = vector.broadcast %cst_6 : f32 to vector<8x64xf32>
    %8 = arith.maximumf %6, %7 : vector<8x64xf32>
    %c0_7 = arith.constant 0 : index
    %c0_8 = arith.constant 0 : index
    %9 = vector.load %arg4[%c0_7, %c0_8] : memref<64x64xf32, #tpu.memory_space<vmem>>, vector<64x64xf32>
    %cst_9 = arith.constant dense<0.000000e+00> : vector<8x64xf32>
    %10 = tpu.matmul %8, %9, %cst_9 {dimension_numbers = #tpu.dot_dimension_numbers<[1], [0], [0], [1], [0, 0, 1, 1], [], []>} : vector<8x64xf32>, vector<64x64xf32>, vector<8x64xf32> -> vector<8x64xf32>
    %c0_10 = arith.constant 0 : index
    %c0_11 = arith.constant 0 : index
    %11 = vector.load %arg5[%c0_10, %c0_11] : memref<1x64xf32, #tpu.memory_space<vmem>>, vector<1x64xf32>
    %12 = vector.broadcast %11 : vector<1x64xf32> to vector<8x64xf32>
    %13 = arith.addf %10, %12 : vector<8x64xf32>
    %cst_12 = arith.constant 0.000000e+00 : f32
    %14 = vector.broadcast %cst_12 : f32 to vector<8x64xf32>
    %15 = arith.maximumf %13, %14 : vector<8x64xf32>
    %c0_13 = arith.constant 0 : index
    %c0_14 = arith.constant 0 : index
    %16 = vector.load %arg6[%c0_13, %c0_14] : memref<64x2xf32, #tpu.memory_space<vmem>>, vector<64x2xf32>
    %cst_15 = arith.constant dense<0.000000e+00> : vector<8x2xf32>
    %17 = tpu.matmul %15, %16, %cst_15 {dimension_numbers = #tpu.dot_dimension_numbers<[1], [0], [0], [1], [0, 0, 1, 1], [], []>} : vector<8x64xf32>, vector<64x2xf32>, vector<8x2xf32> -> vector<8x2xf32>
    %c0_16 = arith.constant 0 : index
    %c0_17 = arith.constant 0 : index
    %18 = vector.load %arg7[%c0_16, %c0_17] : memref<1x2xf32, #tpu.memory_space<vmem>>, vector<1x2xf32>
    %19 = vector.broadcast %18 : vector<1x2xf32> to vector<8x2xf32>
    %20 = arith.addf %17, %19 : vector<8x2xf32>
    %21 = vector.shape_cast %20 : vector<8x2xf32> to vector<1x8x2xf32>
    %22 = vector.extract_strided_slice %21 {offsets = [0, 0, 0], sizes = [1, 8, 1], strides = [1, 1, 1]} : vector<1x8x2xf32> to vector<1x8x1xf32>
    %23 = vector.extract_strided_slice %21 {offsets = [0, 0, 1], sizes = [1, 8, 1], strides = [1, 1, 1]} : vector<1x8x2xf32> to vector<1x8x1xf32>
    %cst_18 = arith.constant dense<0xFF800000> : vector<1x1xf32>
    %24 = vector.multi_reduction <maximumf>, %22, %cst_18 [1] : vector<1x8x1xf32> to vector<1x1xf32>
    %25 = vector.shape_cast %24 : vector<1x1xf32> to vector<1x1x1xf32>
    %26 = vector.broadcast %25 : vector<1x1x1xf32> to vector<1x8x1xf32>
    %27 = arith.subf %22, %26 : vector<1x8x1xf32>
    %28 = math.exp %27 : vector<1x8x1xf32>
    %cst_19 = arith.constant dense<0.000000e+00> : vector<1x1xf32>
    %29 = vector.multi_reduction <add>, %28, %cst_19 [1] : vector<1x8x1xf32> to vector<1x1xf32>
    %30 = vector.shape_cast %29 : vector<1x1xf32> to vector<1x1x1xf32>
    %31 = vector.broadcast %30 : vector<1x1x1xf32> to vector<1x8x1xf32>
    %32 = arith.divf %28, %31 : vector<1x8x1xf32>
    %33 = arith.mulf %23, %32 : vector<1x8x1xf32>
    %34 = tpu.concatenate %33, %32 in 2 : vector<1x8x1xf32>, vector<1x8x1xf32> -> vector<1x8x2xf32>
    %c0_20 = arith.constant 0 : index
    %c0_21 = arith.constant 0 : index
    %c0_22 = arith.constant 0 : index
    %35 = vector.load %arg8[%c0_20, %c0_21, %c0_22] : memref<1x8x2xf32, #tpu.memory_space<vmem>>, vector<1x8x2xf32>
    tpu.vector_store %arg8[%c0_20, %c0_21, %c0_22], %34 {strides = array<i32>} : memref<1x8x2xf32, #tpu.memory_space<vmem>>, vector<1x8x2xf32>,
    return
  }
  func.func @transform_0(%arg0: i32) -> (i32, i32, i32) {
    %c0_i32 = arith.constant 0 : i32
    %c0_i32_0 = arith.constant 0 : i32
    %c0_i32_1 = arith.constant 0 : i32
    return %arg0, %c0_i32, %c0_i32_0 : i32, i32, i32
  }
  func.func @transform_1(%arg0: i32) -> (i32, i32) {
    %c0_i32 = arith.constant 0 : i32
    %c0_i32_0 = arith.constant 0 : i32
    %c0_i32_1 = arith.constant 0 : i32
    return %c0_i32, %c0_i32_0 : i32, i32
  }
  func.func @transform_2(%arg0: i32) -> (i32, i32) {
    %c0_i32 = arith.constant 0 : i32
    %c0_i32_0 = arith.constant 0 : i32
    %c0_i32_1 = arith.constant 0 : i32
    return %c0_i32, %c0_i32_0 : i32, i32
  }
  func.func @transform_3(%arg0: i32) -> (i32, i32) {
    %c0_i32 = arith.constant 0 : i32
    %c0_i32_0 = arith.constant 0 : i32
    %c0_i32_1 = arith.constant 0 : i32
    return %c0_i32, %c0_i32_0 : i32, i32
  }
  func.func @transform_4(%arg0: i32) -> (i32, i32) {
    %c0_i32 = arith.constant 0 : i32
    %c0_i32_0 = arith.constant 0 : i32
    %c0_i32_1 = arith.constant 0 : i32
    return %c0_i32, %c0_i32_0 : i32, i32
  }
  func.func @transform_5(%arg0: i32) -> (i32, i32) {
    %c0_i32 = arith.constant 0 : i32
    %c0_i32_0 = arith.constant 0 : i32
    %c0_i32_1 = arith.constant 0 : i32
    return %c0_i32, %c0_i32_0 : i32, i32
  }
  func.func @transform_6(%arg0: i32) -> (i32, i32) {
    %c0_i32 = arith.constant 0 : i32
    %c0_i32_0 = arith.constant 0 : i32
    %c0_i32_1 = arith.constant 0 : i32
    return %c0_i32, %c0_i32_0 : i32, i32
  }
  func.func @transform_7(%arg0: i32) -> (i32, i32, i32) {
    %c0_i32 = arith.constant 0 : i32
    %c0_i32_0 = arith.constant 0 : i32
    %c0_i32_1 = arith.constant 0 : i32
    return %arg0, %c0_i32, %c0_i32_0 : i32, i32, i32
  }
}

</mosaic_0001>

<llo_original>
// kernel: expert_policy_forward_batched.1
$region0: #{expert_policy_forward_batched.1}
  #allocation0 [shape = 'u32[]', space=smem, size = 0x4, offset = 0x4, fixed_abs, tag = 'smem constant byte address 0x4 - core index']
  #allocation1 [shape = 'u32[72,128]{1,0:T(1,128)}', space=vmem, size = 0x9000, scoped, tag = 'internal scratch']
  %s0 = inlined_call_operand.hbm [shape: f32[1,8,16], index: 0, kind: input, shape index: {}]
  %s1 = inlined_call_operand.hbm [shape: f32[16,64], index: 1, kind: input, shape index: {}]
  %s2 = inlined_call_operand.vmem [shape: f32[1,64], index: 2, kind: input, shape index: {}]
  %s3 = inlined_call_operand.vmem [shape: f32[64,64], index: 3, kind: input, shape index: {}]
  %s4 = inlined_call_operand.vmem [shape: f32[1,64], index: 4, kind: input, shape index: {}]
  %s5 = inlined_call_operand.vmem [shape: f32[64,2], index: 5, kind: input, shape index: {}]
  %s6 = inlined_call_operand.vmem [shape: f32[1,2], index: 6, kind: input, shape index: {}]
  %s7 = inlined_call_operand.vmem [shape: f32[1,8,2], index: 7, kind: output, shape index: {}]
  %s8 = sld [smem:[#allocation0]]
  $region46: #{expert_policy_forward_batched.1} parent=0
    _
  %s10 = ssub.s32 1, %s8
  %s11 = scalar_select 0, %s10, %s8
  $region1: #{expert_policy_forward_batched.1} parent=0
    #allocation2 [shape = 'u8[4096]{0}', space=vmem, size = 0x1000, scoped, tag = 'input window, operand 0, single buffered']
    #allocation3 [shape = 's32[1]{0}', space=sflag, size = 0x4, scoped, tag = 'scoped memory for expert_policy_forward_batched.1']
    #allocation4 [shape = 'u8[8192]{0}', space=vmem, size = 0x2000, scoped, tag = 'input window, operand 1, single buffered']
    #allocation5 [shape = 's32[1]{0}', space=sflag, size = 0x4, scoped, tag = 'scoped memory for expert_policy_forward_batched.1']
    %12 = vsyncpa [#allocation3], 0
    %13 = vsyncpa [#allocation5], 0
    // Predicated region
    $region2: #{expert_policy_forward_batched.1} parent=1 // pred_check
      _
    $region3: #{expert_policy_forward_batched.1} parent=1 // pred_check_branch
      %15 = sbr.rel (0) target = $region5
    $region4: #{expert_policy_forward_batched.1} parent=1 // pred_region
      %17 = vsyncadd [#allocation3], 0
      %s19 = sshll.u32 %s0, 4
      %s20 = int_to_ptr.hbm [resolvable:$true] %s19
      %s21 = sshll.u32 [#allocation2], 4
      %s22 = int_to_ptr.vmem [resolvable:$true] %s21
      %24 = dma.hbm_to_vmem [thread:$0]  %s20, 128, %s22, [#allocation3]
    $region5: #{expert_policy_forward_batched.1} parent=1 // pred_fallthru
      _
    // Predicated region
    $region6: #{expert_policy_forward_batched.1} parent=1 // pred_check
      _
    $region7: #{expert_policy_forward_batched.1} parent=1 // pred_check_branch
      %26 = sbr.rel (0) target = $region9
    $region8: #{expert_policy_forward_batched.1} parent=1 // pred_region
      %28 = vsyncadd [#allocation5], 0
      %s29 = sshll.u32 %s1, 4
      %s30 = int_to_ptr.hbm [resolvable:$true] %s29
      %s31 = sshll.u32 [#allocation4], 4
      %s32 = int_to_ptr.vmem [resolvable:$true] %s31
      %37 = dma.hbm_to_vmem [thread:$0]  %s30, 256, %s32, [#allocation5], 128, 128, 8
    $region9: #{expert_policy_forward_batched.1} parent=1 // pred_fallthru
      _
    // Predicated region
    $region10: #{expert_policy_forward_batched.1} parent=1 // pred_check
      _
    $region11: #{expert_policy_forward_batched.1} parent=1 // pred_check_branch
      %39 = sbr.rel (0) target = $region13
    $region12: #{expert_policy_forward_batched.1} parent=1 // pred_region
      _
    $region13: #{expert_policy_forward_batched.1} parent=1 // pred_fallthru
      _
    // Predicated region
    $region14: #{expert_policy_forward_batched.1} parent=1 // pred_check
      _
    $region15: #{expert_policy_forward_batched.1} parent=1 // pred_check_branch
      %41 = sbr.rel (0) target = $region17
    $region16: #{expert_policy_forward_batched.1} parent=1 // pred_region
      _
    $region17: #{expert_policy_forward_batched.1} parent=1 // pred_fallthru
      _
    // Predicated region
    $region18: #{expert_policy_forward_batched.1} parent=1 // pred_check
      _
    $region19: #{expert_policy_forward_batched.1} parent=1 // pred_check_branch
      %43 = sbr.rel (0) target = $region21
    $region20: #{expert_policy_forward_batched.1} parent=1 // pred_region
      _
    $region21: #{expert_policy_forward_batched.1} parent=1 // pred_fallthru
      _
    // Predicated region
    $region22: #{expert_policy_forward_batched.1} parent=1 // pred_check
      _
    $region23: #{expert_policy_forward_batched.1} parent=1 // pred_check_branch
      %45 = sbr.rel (0) target = $region25
    $region24: #{expert_policy_forward_batched.1} parent=1 // pred_region
      _
    $region25: #{expert_policy_forward_batched.1} parent=1 // pred_fallthru
      _
    // Predicated region
    $region26: #{expert_policy_forward_batched.1} parent=1 // pred_check
      _
    $region27: #{expert_policy_forward_batched.1} parent=1 // pred_check_branch
      %47 = sbr.rel (0) target = $region29
    $region28: #{expert_policy_forward_batched.1} parent=1 // pred_region
      _
    $region29: #{expert_policy_forward_batched.1} parent=1 // pred_fallthru
      _
    // Predicated region
    $region30: #{expert_policy_forward_batched.1} parent=1 // pred_check
      _
    $region31: #{expert_policy_forward_batched.1} parent=1 // pred_check_branch
      %49 = sbr.rel (0) target = $region33
    $region32: #{expert_policy_forward_batched.1} parent=1 // pred_region
      %51 = dma.done [#allocation3], 128
    $region33: #{expert_policy_forward_batched.1} parent=1 // pred_fallthru
      _
    // Predicated region
    $region34: #{expert_policy_forward_batched.1} parent=1 // pred_check
      _
    $region35: #{expert_policy_forward_batched.1} parent=1 // pred_check_branch
      %53 = sbr.rel (0) target = $region37
    $region36: #{expert_policy_forward_batched.1} parent=1 // pred_region
      %55 = dma.done [#allocation5], 256
    $region37: #{expert_policy_forward_batched.1} parent=1 // pred_fallthru
      _
    %v56 = vld [vmem:[#allocation2] sm:$0xff]
    %v57 = vld [vmem:[#allocation4] sm:$0xff]
    %v58 = vld [vmem:[#allocation4 + $0x8] sm:$0xff]
    %v59 = vld [vmem:[%s2] sm:$0x1]
    %v61 = vperm.slane %v59, 0
    %vm63 = vcmask 130048
    %v65 = vsel %vm63, %v56, 0
    %67 = vmatpush.msra.mxu0 0.0
    %68 = vmatpush.msra.mxu0 0.0
    %69 = vmatpush.msra.mxu0 0.0
    %70 = vmatpush.msra.mxu0 0.0
    %71 = vmatpush.msra.mxu0 0.0
    %72 = vmatpush.msra.mxu0 0.0
    %73 = vmatpush.msra.mxu0 0.0
    %74 = vmatpush.msra.mxu0 0.0
    %75 = vmatpush.msra.mxu0 0.0
    %76 = vmatpush.msra.mxu0 0.0
    %77 = vmatpush.msra.mxu0 0.0
    %78 = vmatpush.msra.mxu0 0.0
    %79 = vmatpush.msra.mxu0 0.0
    %80 = vmatpush.msra.mxu0 0.0
    %81 = vmatpush.msra.mxu0 %v58
    %82 = vmatpush.msra.mxu0 %v57
    %83 = vmatmul.f32.gmra.mxu0 %v65
    %v84 = vpop.f32.mrf.mxu0
    %v85 = vadd.f32 %v61, %v84
    %86 = vdwg.mxu0
    %v87 = vmax.f32 %v85, 0.0
    %v88 = vld [vmem:[%s3] sm:$0xff]
    %v89 = vld [vmem:[%s3 + $0x8] sm:$0xff]
    %v90 = vld [vmem:[%s3 + $0x10] sm:$0xff]
    %v91 = vld [vmem:[%s3 + $0x18] sm:$0xff]
    %v92 = vld [vmem:[%s3 + $0x20] sm:$0xff]
    %v93 = vld [vmem:[%s3 + $0x28] sm:$0xff]
    %v94 = vld [vmem:[%s3 + $0x30] sm:$0xff]
    %v95 = vld [vmem:[%s3 + $0x38] sm:$0xff]
    %v96 = vld [vmem:[%s4] sm:$0x1]
    %v98 = vperm.slane %v96, 0
    %vm100 = vcmask 523264
    %v102 = vsel %vm100, %v87, 0
    %104 = vmatpush.msra.mxu0 0.0
    %105 = vmatpush.msra.mxu0 0.0
    %106 = vmatpush.msra.mxu0 0.0
    %107 = vmatpush.msra.mxu0 0.0
    %108 = vmatpush.msra.mxu0 0.0
    %109 = vmatpush.msra.mxu0 0.0
    %110 = vmatpush.msra.mxu0 0.0
    %111 = vmatpush.msra.mxu0 0.0
    %112 = vmatpush.msra.mxu0 %v95
    %113 = vmatpush.msra.mxu0 %v94
    %114 = vmatpush.msra.mxu0 %v93
    %115 = vmatpush.msra.mxu0 %v92
    %116 = vmatpush.msra.mxu0 %v91
    %117 = vmatpush.msra.mxu0 %v90
    %118 = vmatpush.msra.mxu0 %v89
    %119 = vmatpush.msra.mxu0 %v88
    %120 = vmatmul.f32.gmra.mxu0 %v102
    %v121 = vpop.f32.mrf.mxu0
    %v122 = vadd.f32 %v98, %v121
    %123 = vdwg.mxu0
    %v124 = vmax.f32 %v122, 0.0
    %v125 = vld [vmem:[%s5] sm:$0xff]
    %v126 = vld [vmem:[%s5 + $0x8] sm:$0xff]
    %v127 = vld [vmem:[%s5 + $0x10] sm:$0xff]
    %v128 = vld [vmem:[%s5 + $0x18] sm:$0xff]
    %v129 = vld [vmem:[%s5 + $0x20] sm:$0xff]
    %v130 = vld [vmem:[%s5 + $0x28] sm:$0xff]
    %v131 = vld [vmem:[%s5 + $0x30] sm:$0xff]
    %v132 = vld [vmem:[%s5 + $0x38] sm:$0xff]
    %v133 = vld [vmem:[%s6] sm:$0x1]
    %v135 = vperm.slane %v133, 0
    %v138 = vsel %vm100, %v124, 0
    %140 = vmatpush.msra.mxu0 0.0
    %141 = vmatpush.msra.mxu0 0.0
    %142 = vmatpush.msra.mxu0 0.0
    %143 = vmatpush.msra.mxu0 0.0
    %144 = vmatpush.msra.mxu0 0.0
    %145 = vmatpush.msra.mxu0 0.0
    %146 = vmatpush.msra.mxu0 0.0
    %147 = vmatpush.msra.mxu0 0.0
    %148 = vmatpush.msra.mxu0 %v132
    %149 = vmatpush.msra.mxu0 %v131
    %150 = vmatpush.msra.mxu0 %v130
    %151 = vmatpush.msra.mxu0 %v129
    %152 = vmatpush.msra.mxu0 %v128
    %153 = vmatpush.msra.mxu0 %v127
    %154 = vmatpush.msra.mxu0 %v126
    %155 = vmatpush.msra.mxu0 %v125
    %156 = vmatmul.f32.gmra.mxu0 %v138
    %v157 = vpop.f32.mrf.mxu0
    %v158 = vadd.f32 %v135, %v157
    %159 = vdwg.mxu0
    %vm160 = vcmask 7168
    %v161 = vsel %vm160, %v158, -inf
    %v162 = vrot.slane %v161, 4
    %v163 = vmax.f32 %v161, %v162
    %v164 = vrot.slane %v163, 2
    %v165 = vmax.f32 %v163, %v164
    %v166 = vrot.slane %v165, 1
    %v167 = vmax.f32 %v165, %v166
    %v168 = vsub.f32 %v158, %v167
    %v169 = vmul.f32 %v168, 1.442695
    %v170 = vpow.pop %v169
    %v171 = vsel %vm160, %v170, 0.0
    %v172 = vrot.slane %v171, 4
    %v173 = vadd.f32 %v171, %v172
    %v174 = vrot.slane %v173, 2
    %v175 = vadd.f32 %v173, %v174
    %v176 = vrot.slane %v175, 1
    %v177 = vadd.f32 %v175, %v176
    %v178 = vrcp.pop %v177
    %v179 = vmul.f32 %v177, %v178
    %v180 = vsub.f32 1.0, %v179
    %v181 = vmul.f32 %v178, %v180
    %v182 = vadd.f32 %v178, %v181
    %vm183 = vweird.f32 %v177
    %vm184 = vweird.f32 %v178
    %vm185 = vmor %vm183, %vm184
    %v186 = vsel %vm185, %v178, %v182
    %v187 = vand.u32 2147483647, %v177
    %vm188 = vcmp.eq.f32.partialorder %v187, 8.507059e+37
    %v189 = vand.u32 %v177, 2147483648
    %v190 = vor.u32 1.1754944e-38, %v189
    %v191 = vsel %vm188, %v190, %v186
    %v192 = vmul.f32 %v170, %v191
    %194 = vrot.lane.b32.xlu0 %v192, 1
    %v195 = vpop.permute.xlu0 %194
    %v197 = vmul.f32 %v158, %v195
    %199 = vrot.lane.b32.xlu0 %v197, 127
    %v200 = vpop.permute.xlu0 %199
    %v202 = vsel %vm160, %v200, %v195
    %vm203 = vcmask 15360
    %204 = vst.msk [vmem:[%s7] sm:$0xff] %vm203, %v202
    // Predicated region
    $region38: #{expert_policy_forward_batched.1} parent=1 // pred_check
      _
    $region39: #{expert_policy_forward_batched.1} parent=1 // pred_check_branch
      %206 = sbr.rel (0) target = $region41
    $region40: #{expert_policy_forward_batched.1} parent=1 // pred_region
      _
    $region41: #{expert_policy_forward_batched.1} parent=1 // pred_fallthru
      _
    // Predicated region
    $region42: #{expert_policy_forward_batched.1} parent=1 // pred_check
      _
    $region43: #{expert_policy_forward_batched.1} parent=1 // pred_check_branch
      %208 = sbr.rel (0) target = $region45
    $region44: #{expert_policy_forward_batched.1} parent=1 // pred_region
      _
    $region45: #{expert_policy_forward_batched.1} parent=1 // pred_fallthru
      _
    %209 = vsyncpa [#allocation3], 1
    %210 = vsyncpa [#allocation5], 1

</llo_original>
